<compile_context>
chip_gen: v6e
topology: v6e:2x2x1
jax: 0.10.0
libtpu: 0.0.40
codegen_flags: <defaults>
</compile_context>

<pallas_src>
import functools

import numpy as np
import jax
import jax.numpy as jnp
from jax import lax
from jax.experimental import pallas as pl
from jax.experimental.pallas import tpu as pltpu


def _sns_kernel(scores_ref, noise_ref, logv_ref, w_ref, tau_ref,
                khot_ref, ll_ref, *, k):
    """One (Rt, M) row-block per grid step."""
    f32 = jnp.float32
    Rt, M = scores_ref.shape
    Tp = logv_ref.shape[1]

    inv_tau = f32(1.0) / tau_ref[0]
    phi = scores_ref[...].astype(f32) * inv_tau            # (Rt, M)
    perturbed = phi + noise_ref[...]                       # Gumbel(phi, 1) sample

    # log-softmax normalizer (full log_p never materialized)
    mx = jnp.max(phi, axis=-1, keepdims=True)
    lse = mx + jnp.log(jnp.sum(jnp.exp(phi - mx), axis=-1, keepdims=True))

    lane = lax.broadcasted_iota(jnp.int32, (Rt, M), 1)

    # grid-invariant quadrature constants (host-precomputed, hoisted broadcast)
    log_v = jnp.broadcast_to(logv_ref[...], (Rt, Tp))      # log sigmoid(x)
    w = w_ref[...]                                         # trapezoid weights (1, Tp)

    # ---- iterative top-k (k small & static) + k-hot + subset-prob product ----
    khot = jnp.zeros((Rt, M), f32)
    work = perturbed
    p_S = jnp.zeros((Rt, 1), f32)
    prod = jnp.ones((Rt, Tp), f32)                         # prod_j (1 - v^{p_j})
    for _ in range(k):
        m_j = jnp.max(work, axis=-1, keepdims=True)
        idx = jnp.min(jnp.where(work == m_j, lane, M), axis=-1, keepdims=True)
        sel = lane == idx                                  # exactly one lane per row
        khot = jnp.where(sel, f32(1.0), khot)
        phi_sel = jnp.sum(jnp.where(sel, phi, f32(0.0)), axis=-1, keepdims=True)
        p_j = jnp.exp(phi_sel - lse)                       # softmax prob of pick j
        p_S = p_S + p_j
        vpj = jnp.exp(p_j * log_v)                         # v^{p_j}, (Rt, Tp)
        prod = prod * (f32(1.0) - jnp.minimum(vpj, f32(1.0 - 1e-7)))
        work = jnp.where(sel, -jnp.inf, work)
    khot_ref[...] = khot

    # ---- unordered subset log-probability (linear-domain quadrature) ----
    p_S = jnp.minimum(p_S, f32(1.0 - 1e-6))
    integrand = w * jnp.exp(-p_S * log_v) * prod           # (Rt, Tp)
    integral = jnp.sum(integrand, axis=-1, keepdims=True)  # (Rt, 1)
    ll_ref[...] = jnp.log1p(-p_S) + jnp.log(jnp.maximum(integral, f32(1e-35)))


def _quad_constants(num_points, a, t_pad):
    """Trapezoid quadrature for v = sigmoid(x), x in [-a, a]; padded w=0 lanes."""
    x = np.linspace(-a, a, num_points, dtype=np.float64)
    dx = 2.0 * a / (num_points - 1)
    v = 1.0 / (1.0 + np.exp(-x))                     # sigmoid(x)
    log_v = np.full((t_pad,), -1.0, np.float64)      # pad value: arbitrary finite
    w = np.zeros((t_pad,), np.float64)               # pad weight 0 -> exact
    log_v[:num_points] = np.log(v)
    w[:num_points] = dx * v * (1.0 - v)              # dv = sigmoid'(x) dx
    w[0] *= 0.5
    w[num_points - 1] *= 0.5                         # trapezoid endpoints
    return (jnp.asarray(log_v, dtype=jnp.float32).reshape(1, t_pad),
            jnp.asarray(w, dtype=jnp.float32).reshape(1, t_pad))


def _pick_row_tile(rows, m, t_pad):
    """Row-block size: big enough to amortize step overhead, small enough for
    VMEM on all generations (budget ~8 MiB incl. double-buffered I/O + temps)."""
    per_row_bytes = 4 * (12 * m + 2 * t_pad) + 64
    rt = (8 << 20) // max(per_row_bytes, 1)
    rt = max(8, min(512, (rt // 8) * 8))
    if rows <= rt:
        return rows, rows                            # single step, block == full dim
    rows_p = ((rows + rt - 1) // rt) * rt
    return rt, rows_p


class SubsetNeighborhoodSamplerPallas:
    """Training-mode forward of SubsetNeighborhoodSampler (estimator='unord')."""

    def __init__(self, k, estimator="unord", num_points=100, a=5.0):
        if estimator != "unord":
            raise NotImplementedError("only the 'unord' estimator is implemented")
        self.k = int(k)
        self.num_points = int(num_points)
        self.a = float(a)

    def __call__(self, scores, tau, key):
        B, N, M = scores.shape
        rows = B * N
        t_pad = max(128, ((self.num_points + 127) // 128) * 128)
        rt, rows_p = _pick_row_tile(rows, M, t_pad)

        # scores passed through in their native dtype (cast inside the kernel).
        scores2 = scores.reshape(rows, M)
        if rows_p != rows:
            scores2 = jnp.pad(scores2, ((0, rows_p - rows), (0, 0)))
        # Gumbel(0,1) noise generated on the host (pltpu PRNG primitives have no
        # CPU/interpret lowering); the kernel adds it to phi = scores / tau.
        noise = jax.random.gumbel(key, (rows_p, M), dtype=jnp.float32)
        log_v, w = _quad_constants(self.num_points, self.a, t_pad)
        tau_arr = jnp.asarray([tau], dtype=jnp.float32)

        kernel = functools.partial(_sns_kernel, k=self.k)
        grid = (rows_p // rt,)

        khot, ll = pl.pallas_call(
            kernel,
            out_shape=(
                jax.ShapeDtypeStruct((rows_p, M), jnp.float32),
                jax.ShapeDtypeStruct((rows_p, 1), jnp.float32),
            ),
            grid=grid,
            in_specs=[
                pl.BlockSpec((rt, M), lambda r: (r, 0)),          # scores
                pl.BlockSpec((rt, M), lambda r: (r, 0)),          # gumbel noise
                pl.BlockSpec((1, t_pad), lambda r: (0, 0)),       # log sigmoid(x)
                pl.BlockSpec((1, t_pad), lambda r: (0, 0)),       # trapezoid weights
                pl.BlockSpec(memory_space=pltpu.MemorySpace.SMEM),  # tau (scalar)
            ],
            out_specs=(
                pl.BlockSpec((rt, M), lambda r: (r, 0)),          # khot (lane-dense)
                pl.BlockSpec((rt, 1), lambda r: (r, 0)),          # subset log-lik
            ),
            compiler_params=pltpu.CompilerParams(
                dimension_semantics=("parallel",),                # rows independent
                vmem_limit_bytes=32 * 1024 * 1024,
            ),
        )(scores2, noise, log_v, w, tau_arr)

        khot = khot[:rows].reshape(B, N, M)
        ll = ll[:rows, 0].reshape(B, N)
        return khot, ll


if __name__ == "__main__":
    B, N, M, K = 2, 8, 128, 4
    key = jax.random.PRNGKey(0)
    k_scores, k_noise = jax.random.split(key)
    scores = jax.random.normal(k_scores, (B, N, M), dtype=jnp.float32)
    tau = 0.5

    sampler = SubsetNeighborhoodSamplerPallas(k=K)
    khot, ll = sampler(scores, tau, key=k_noise)
    khot, ll = jax.block_until_ready((khot, ll))

    # sanity checks: exactly k ones per row, finite subset log-likelihood
    khot_np = np.asarray(khot)
    ll_np = np.asarray(ll)
    assert khot_np.shape == (B, N, M) and ll_np.shape == (B, N)
    assert np.all(khot_np.sum(axis=-1) == K), khot_np.sum(axis=-1)
    assert np.all((khot_np == 0.0) | (khot_np == 1.0))
    assert np.all(np.isfinite(ll_np)), ll_np

    print("KERNEL_OK")
</pallas_src>

<mosaic_0001>
module attributes {stable_mosaic.version = 11 : i64} {
  func.func @_sns_kernel(%arg0: i32, %arg1: memref<16x128xf32, #tpu.memory_space<vmem>>, %arg2: memref<16x128xf32, #tpu.memory_space<vmem>>, %arg3: memref<1x128xf32, #tpu.memory_space<vmem>>, %arg4: memref<1x128xf32, #tpu.memory_space<vmem>>, %arg5: memref<1xf32, #tpu.memory_space<smem>>, %arg6: memref<16x128xf32, #tpu.memory_space<vmem>>, %arg7: memref<16x1xf32, #tpu.memory_space<vmem>>) attributes {dimension_semantics = [#tpu.dimension_semantics<parallel>], iteration_bounds = array<i64: 1>, scalar_prefetch = 0 : i64, scratch_operands = 0 : i64, tpu.core_type = #tpu.core_type<tc>, window_params = [{transform_indices = @transform_0, window_bounds = array<i64: 16, 128>}, {transform_indices = @transform_1, window_bounds = array<i64: 16, 128>}, {pipeline_mode = #tpu.pipeline_mode<synchronous>, transform_indices = @transform_2, window_bounds = array<i64: 1, 128>}, {pipeline_mode = #tpu.pipeline_mode<synchronous>, transform_indices = @transform_3, window_bounds = array<i64: 1, 128>}, {transform_indices = @transform_4, window_bounds = array<i64: 1>}, {transform_indices = @transform_5, window_bounds = array<i64: 16, 128>}, {transform_indices = @transform_6, window_bounds = array<i64: 16, 1>}]} {
    %c0 = arith.constant 0 : index
    %0 = memref.load %arg5[%c0] : memref<1xf32, #tpu.memory_space<smem>>
    %cst = arith.constant 1.000000e+00 : f32
    %1 = arith.divf %cst, %0 : f32
    %c0_0 = arith.constant 0 : index
    %c0_1 = arith.constant 0 : index
    %2 = vector.load %arg1[%c0_0, %c0_1] : memref<16x128xf32, #tpu.memory_space<vmem>>, vector<16x128xf32>
    %3 = vector.broadcast %1 : f32 to vector<16x128xf32>
    %4 = arith.mulf %2, %3 : vector<16x128xf32>
    %c0_2 = arith.constant 0 : index
    %c0_3 = arith.constant 0 : index
    %5 = vector.load %arg2[%c0_2, %c0_3] : memref<16x128xf32, #tpu.memory_space<vmem>>, vector<16x128xf32>
    %6 = arith.addf %4, %5 : vector<16x128xf32>
    %cst_4 = arith.constant dense<0xFF800000> : vector<16xf32>
    %7 = vector.multi_reduction <maximumf>, %4, %cst_4 [1] : vector<16x128xf32> to vector<16xf32>
    %8 = vector.shape_cast %7 : vector<16xf32> to vector<16x1xf32>
    %9 = vector.broadcast %8 : vector<16x1xf32> to vector<16x128xf32>
    %10 = arith.subf %4, %9 : vector<16x128xf32>
    %11 = math.exp %10 : vector<16x128xf32>
    %cst_5 = arith.constant dense<0.000000e+00> : vector<16xf32>
    %12 = vector.multi_reduction <add>, %11, %cst_5 [1] : vector<16x128xf32> to vector<16xf32>
    %13 = vector.shape_cast %12 : vector<16xf32> to vector<16x1xf32>
    %14 = math.log %13 : vector<16x1xf32>
    %15 = arith.addf %8, %14 : vector<16x1xf32>
    %16 = tpu.iota {dimensions = array<i32: 1>} : vector<16x128xi32>
    %c0_6 = arith.constant 0 : index
    %c0_7 = arith.constant 0 : index
    %17 = vector.load %arg3[%c0_6, %c0_7] : memref<1x128xf32, #tpu.memory_space<vmem>>, vector<1x128xf32>
    %18 = vector.shape_cast %17 : vector<1x128xf32> to vector<1x128xf32>
    %19 = vector.broadcast %18 : vector<1x128xf32> to vector<16x128xf32>
    %c0_8 = arith.constant 0 : index
    %c0_9 = arith.constant 0 : index
    %20 = vector.load %arg4[%c0_8, %c0_9] : memref<1x128xf32, #tpu.memory_space<vmem>>, vector<1x128xf32>
    %cst_10 = arith.constant 0.000000e+00 : f32
    %21 = vector.broadcast %cst_10 : f32 to vector<16x128xf32>
    %cst_11 = arith.constant 0.000000e+00 : f32
    %22 = vector.broadcast %cst_11 : f32 to vector<16x1xf32>
    %cst_12 = arith.constant 1.000000e+00 : f32
    %23 = vector.broadcast %cst_12 : f32 to vector<16x128xf32>
    %cst_13 = arith.constant dense<0xFF800000> : vector<16xf32>
    %24 = vector.multi_reduction <maximumf>, %6, %cst_13 [1] : vector<16x128xf32> to vector<16xf32>
    %25 = vector.shape_cast %24 : vector<16xf32> to vector<16x1xf32>
    %26 = vector.broadcast %25 : vector<16x1xf32> to vector<16x128xf32>
    %27 = arith.cmpf oeq, %6, %26 : vector<16x128xf32>
    %c128_i32 = arith.constant 128 : i32
    %28 = vector.broadcast %c128_i32 : i32 to vector<16x128xi32>
    %29 = arith.select %27, %16, %28 : vector<16x128xi1>, vector<16x128xi32>
    %cst_14 = arith.constant dense<2147483647> : vector<16xi32>
    %30 = vector.multi_reduction <minsi>, %29, %cst_14 [1] : vector<16x128xi32> to vector<16xi32>
    %31 = vector.shape_cast %30 : vector<16xi32> to vector<16x1xi32>
    %32 = vector.broadcast %31 : vector<16x1xi32> to vector<16x128xi32>
    %33 = arith.cmpi eq, %16, %32 : vector<16x128xi32>
    %cst_15 = arith.constant 1.000000e+00 : f32
    %34 = vector.broadcast %cst_15 : f32 to vector<16x128xf32>
    %35 = arith.select %33, %34, %21 : vector<16x128xi1>, vector<16x128xf32>
    %cst_16 = arith.constant 0.000000e+00 : f32
    %36 = vector.broadcast %cst_16 : f32 to vector<16x128xf32>
    %37 = arith.select %33, %4, %36 : vector<16x128xi1>, vector<16x128xf32>
    %cst_17 = arith.constant dense<0.000000e+00> : vector<16xf32>
    %38 = vector.multi_reduction <add>, %37, %cst_17 [1] : vector<16x128xf32> to vector<16xf32>
    %39 = vector.shape_cast %38 : vector<16xf32> to vector<16x1xf32>
    %40 = arith.subf %39, %15 : vector<16x1xf32>
    %41 = math.exp %40 : vector<16x1xf32>
    %42 = arith.addf %22, %41 : vector<16x1xf32>
    %43 = vector.broadcast %41 : vector<16x1xf32> to vector<16x128xf32>
    %44 = arith.mulf %43, %19 : vector<16x128xf32>
    %45 = math.exp %44 : vector<16x128xf32>
    %cst_18 = arith.constant 0.99999988 : f32
    %46 = vector.broadcast %cst_18 : f32 to vector<16x128xf32>
    %47 = arith.minimumf %45, %46 : vector<16x128xf32>
    %cst_19 = arith.constant 1.000000e+00 : f32
    %48 = vector.broadcast %cst_19 : f32 to vector<16x128xf32>
    %49 = arith.subf %48, %47 : vector<16x128xf32>
    %50 = arith.mulf %23, %49 : vector<16x128xf32>
    %cst_20 = arith.constant 0xFF800000 : f32
    %51 = vector.broadcast %cst_20 : f32 to vector<16x128xf32>
    %52 = arith.select %33, %51, %6 : vector<16x128xi1>, vector<16x128xf32>
    %cst_21 = arith.constant dense<0xFF800000> : vector<16xf32>
    %53 = vector.multi_reduction <maximumf>, %52, %cst_21 [1] : vector<16x128xf32> to vector<16xf32>
    %54 = vector.shape_cast %53 : vector<16xf32> to vector<16x1xf32>
    %55 = vector.broadcast %54 : vector<16x1xf32> to vector<16x128xf32>
    %56 = arith.cmpf oeq, %52, %55 : vector<16x128xf32>
    %c128_i32_22 = arith.constant 128 : i32
    %57 = vector.broadcast %c128_i32_22 : i32 to vector<16x128xi32>
    %58 = arith.select %56, %16, %57 : vector<16x128xi1>, vector<16x128xi32>
    %cst_23 = arith.constant dense<2147483647> : vector<16xi32>
    %59 = vector.multi_reduction <minsi>, %58, %cst_23 [1] : vector<16x128xi32> to vector<16xi32>
    %60 = vector.shape_cast %59 : vector<16xi32> to vector<16x1xi32>
    %61 = vector.broadcast %60 : vector<16x1xi32> to vector<16x128xi32>
    %62 = arith.cmpi eq, %16, %61 : vector<16x128xi32>
    %cst_24 = arith.constant 1.000000e+00 : f32
    %63 = vector.broadcast %cst_24 : f32 to vector<16x128xf32>
    %64 = arith.select %62, %63, %35 : vector<16x128xi1>, vector<16x128xf32>
    %cst_25 = arith.constant 0.000000e+00 : f32
    %65 = vector.broadcast %cst_25 : f32 to vector<16x128xf32>
    %66 = arith.select %62, %4, %65 : vector<16x128xi1>, vector<16x128xf32>
    %cst_26 = arith.constant dense<0.000000e+00> : vector<16xf32>
    %67 = vector.multi_reduction <add>, %66, %cst_26 [1] : vector<16x128xf32> to vector<16xf32>
    %68 = vector.shape_cast %67 : vector<16xf32> to vector<16x1xf32>
    %69 = arith.subf %68, %15 : vector<16x1xf32>
    %70 = math.exp %69 : vector<16x1xf32>
    %71 = arith.addf %42, %70 : vector<16x1xf32>
    %72 = vector.broadcast %70 : vector<16x1xf32> to vector<16x128xf32>
    %73 = arith.mulf %72, %19 : vector<16x128xf32>
    %74 = math.exp %73 : vector<16x128xf32>
    %cst_27 = arith.constant 0.99999988 : f32
    %75 = vector.broadcast %cst_27 : f32 to vector<16x128xf32>
    %76 = arith.minimumf %74, %75 : vector<16x128xf32>
    %cst_28 = arith.constant 1.000000e+00 : f32
    %77 = vector.broadcast %cst_28 : f32 to vector<16x128xf32>
    %78 = arith.subf %77, %76 : vector<16x128xf32>
    %79 = arith.mulf %50, %78 : vector<16x128xf32>
    %cst_29 = arith.constant 0xFF800000 : f32
    %80 = vector.broadcast %cst_29 : f32 to vector<16x128xf32>
    %81 = arith.select %62, %80, %52 : vector<16x128xi1>, vector<16x128xf32>
    %cst_30 = arith.constant dense<0xFF800000> : vector<16xf32>
    %82 = vector.multi_reduction <maximumf>, %81, %cst_30 [1] : vector<16x128xf32> to vector<16xf32>
    %83 = vector.shape_cast %82 : vector<16xf32> to vector<16x1xf32>
    %84 = vector.broadcast %83 : vector<16x1xf32> to vector<16x128xf32>
    %85 = arith.cmpf oeq, %81, %84 : vector<16x128xf32>
    %c128_i32_31 = arith.constant 128 : i32
    %86 = vector.broadcast %c128_i32_31 : i32 to vector<16x128xi32>
    %87 = arith.select %85, %16, %86 : vector<16x128xi1>, vector<16x128xi32>
    %cst_32 = arith.constant dense<2147483647> : vector<16xi32>
    %88 = vector.multi_reduction <minsi>, %87, %cst_32 [1] : vector<16x128xi32> to vector<16xi32>
    %89 = vector.shape_cast %88 : vector<16xi32> to vector<16x1xi32>
    %90 = vector.broadcast %89 : vector<16x1xi32> to vector<16x128xi32>
    %91 = arith.cmpi eq, %16, %90 : vector<16x128xi32>
    %cst_33 = arith.constant 1.000000e+00 : f32
    %92 = vector.broadcast %cst_33 : f32 to vector<16x128xf32>
    %93 = arith.select %91, %92, %64 : vector<16x128xi1>, vector<16x128xf32>
    %cst_34 = arith.constant 0.000000e+00 : f32
    %94 = vector.broadcast %cst_34 : f32 to vector<16x128xf32>
    %95 = arith.select %91, %4, %94 : vector<16x128xi1>, vector<16x128xf32>
    %cst_35 = arith.constant dense<0.000000e+00> : vector<16xf32>
    %96 = vector.multi_reduction <add>, %95, %cst_35 [1] : vector<16x128xf32> to vector<16xf32>
    %97 = vector.shape_cast %96 : vector<16xf32> to vector<16x1xf32>
    %98 = arith.subf %97, %15 : vector<16x1xf32>
    %99 = math.exp %98 : vector<16x1xf32>
    %100 = arith.addf %71, %99 : vector<16x1xf32>
    %101 = vector.broadcast %99 : vector<16x1xf32> to vector<16x128xf32>
    %102 = arith.mulf %101, %19 : vector<16x128xf32>
    %103 = math.exp %102 : vector<16x128xf32>
    %cst_36 = arith.constant 0.99999988 : f32
    %104 = vector.broadcast %cst_36 : f32 to vector<16x128xf32>
    %105 = arith.minimumf %103, %104 : vector<16x128xf32>
    %cst_37 = arith.constant 1.000000e+00 : f32
    %106 = vector.broadcast %cst_37 : f32 to vector<16x128xf32>
    %107 = arith.subf %106, %105 : vector<16x128xf32>
    %108 = arith.mulf %79, %107 : vector<16x128xf32>
    %cst_38 = arith.constant 0xFF800000 : f32
    %109 = vector.broadcast %cst_38 : f32 to vector<16x128xf32>
    %110 = arith.select %91, %109, %81 : vector<16x128xi1>, vector<16x128xf32>
    %cst_39 = arith.constant dense<0xFF800000> : vector<16xf32>
    %111 = vector.multi_reduction <maximumf>, %110, %cst_39 [1] : vector<16x128xf32> to vector<16xf32>
    %112 = vector.shape_cast %111 : vector<16xf32> to vector<16x1xf32>
    %113 = vector.broadcast %112 : vector<16x1xf32> to vector<16x128xf32>
    %114 = arith.cmpf oeq, %110, %113 : vector<16x128xf32>
    %c128_i32_40 = arith.constant 128 : i32
    %115 = vector.broadcast %c128_i32_40 : i32 to vector<16x128xi32>
    %116 = arith.select %114, %16, %115 : vector<16x128xi1>, vector<16x128xi32>
    %cst_41 = arith.constant dense<2147483647> : vector<16xi32>
    %117 = vector.multi_reduction <minsi>, %116, %cst_41 [1] : vector<16x128xi32> to vector<16xi32>
    %118 = vector.shape_cast %117 : vector<16xi32> to vector<16x1xi32>
    %119 = vector.broadcast %118 : vector<16x1xi32> to vector<16x128xi32>
    %120 = arith.cmpi eq, %16, %119 : vector<16x128xi32>
    %cst_42 = arith.constant 1.000000e+00 : f32
    %121 = vector.broadcast %cst_42 : f32 to vector<16x128xf32>
    %122 = arith.select %120, %121, %93 : vector<16x128xi1>, vector<16x128xf32>
    %cst_43 = arith.constant 0.000000e+00 : f32
    %123 = vector.broadcast %cst_43 : f32 to vector<16x128xf32>
    %124 = arith.select %120, %4, %123 : vector<16x128xi1>, vector<16x128xf32>
    %cst_44 = arith.constant dense<0.000000e+00> : vector<16xf32>
    %125 = vector.multi_reduction <add>, %124, %cst_44 [1] : vector<16x128xf32> to vector<16xf32>
    %126 = vector.shape_cast %125 : vector<16xf32> to vector<16x1xf32>
    %127 = arith.subf %126, %15 : vector<16x1xf32>
    %128 = math.exp %127 : vector<16x1xf32>
    %129 = arith.addf %100, %128 : vector<16x1xf32>
    %130 = vector.broadcast %128 : vector<16x1xf32> to vector<16x128xf32>
    %131 = arith.mulf %130, %19 : vector<16x128xf32>
    %132 = math.exp %131 : vector<16x128xf32>
    %cst_45 = arith.constant 0.99999988 : f32
    %133 = vector.broadcast %cst_45 : f32 to vector<16x128xf32>
    %134 = arith.minimumf %132, %133 : vector<16x128xf32>
    %cst_46 = arith.constant 1.000000e+00 : f32
    %135 = vector.broadcast %cst_46 : f32 to vector<16x128xf32>
    %136 = arith.subf %135, %134 : vector<16x128xf32>
    %137 = arith.mulf %108, %136 : vector<16x128xf32>
    %c0_47 = arith.constant 0 : index
    %c0_48 = arith.constant 0 : index
    %138 = vector.load %arg6[%c0_47, %c0_48] : memref<16x128xf32, #tpu.memory_space<vmem>>, vector<16x128xf32>
    tpu.vector_store %arg6[%c0_47, %c0_48], %122 {strides = array<i32>} : memref<16x128xf32, #tpu.memory_space<vmem>>, vector<16x128xf32>,
    %cst_49 = arith.constant 0.999998986 : f32
    %139 = vector.broadcast %cst_49 : f32 to vector<16x1xf32>
    %140 = arith.minimumf %129, %139 : vector<16x1xf32>
    %cst_50 = arith.constant 0.000000e+00 : f32
    %141 = vector.broadcast %cst_50 : f32 to vector<16x1xf32>
    %142 = arith.subf %141, %140 : vector<16x1xf32>
    %143 = vector.broadcast %142 : vector<16x1xf32> to vector<16x128xf32>
    %144 = arith.mulf %143, %19 : vector<16x128xf32>
    %145 = math.exp %144 : vector<16x128xf32>
    %146 = vector.broadcast %20 : vector<1x128xf32> to vector<16x128xf32>
    %147 = arith.mulf %146, %145 : vector<16x128xf32>
    %148 = arith.mulf %147, %137 : vector<16x128xf32>
    %cst_51 = arith.constant dense<0.000000e+00> : vector<16xf32>
    %149 = vector.multi_reduction <add>, %148, %cst_51 [1] : vector<16x128xf32> to vector<16xf32>
    %150 = vector.shape_cast %149 : vector<16xf32> to vector<16x1xf32>
    %cst_52 = arith.constant 0.000000e+00 : f32
    %151 = vector.broadcast %cst_52 : f32 to vector<16x1xf32>
    %152 = arith.subf %151, %140 : vector<16x1xf32>
    %153 = math.log1p %152 : vector<16x1xf32>
    %cst_53 = arith.constant 1.000000e-35 : f32
    %154 = vector.broadcast %cst_53 : f32 to vector<16x1xf32>
    %155 = arith.maximumf %150, %154 : vector<16x1xf32>
    %156 = math.log %155 : vector<16x1xf32>
    %157 = arith.addf %153, %156 : vector<16x1xf32>
    %c0_54 = arith.constant 0 : index
    %c0_55 = arith.constant 0 : index
    %158 = vector.load %arg7[%c0_54, %c0_55] : memref<16x1xf32, #tpu.memory_space<vmem>>, vector<16x1xf32>
    tpu.vector_store %arg7[%c0_54, %c0_55], %157 {strides = array<i32>} : memref<16x1xf32, #tpu.memory_space<vmem>>, vector<16x1xf32>,
    return
  }
  func.func @transform_0(%arg0: i32) -> (i32, i32) {
    %c0_i32 = arith.constant 0 : i32
    %c0_i32_0 = arith.constant 0 : i32
    return %arg0, %c0_i32 : i32, i32
  }
  func.func @transform_1(%arg0: i32) -> (i32, i32) {
    %c0_i32 = arith.constant 0 : i32
    %c0_i32_0 = arith.constant 0 : i32
    return %arg0, %c0_i32 : i32, i32
  }
  func.func @transform_2(%arg0: i32) -> (i32, i32) {
    %c0_i32 = arith.constant 0 : i32
    %c0_i32_0 = arith.constant 0 : i32
    %c0_i32_1 = arith.constant 0 : i32
    return %c0_i32, %c0_i32_0 : i32, i32
  }
  func.func @transform_3(%arg0: i32) -> (i32, i32) {
    %c0_i32 = arith.constant 0 : i32
    %c0_i32_0 = arith.constant 0 : i32
    %c0_i32_1 = arith.constant 0 : i32
    return %c0_i32, %c0_i32_0 : i32, i32
  }
  func.func @transform_4(%arg0: i32) -> i32 {
    %c0_i32 = arith.constant 0 : i32
    %c0_i32_0 = arith.constant 0 : i32
    return %c0_i32 : i32
  }
  func.func @transform_5(%arg0: i32) -> (i32, i32) {
    %c0_i32 = arith.constant 0 : i32
    %c0_i32_0 = arith.constant 0 : i32
    return %arg0, %c0_i32 : i32, i32
  }
  func.func @transform_6(%arg0: i32) -> (i32, i32) {
    %c0_i32 = arith.constant 0 : i32
    %c0_i32_0 = arith.constant 0 : i32
    return %arg0, %c0_i32 : i32, i32
  }
}

</mosaic_0001>

<llo_original>
// kernel: tpu_custom_call.1
$region0: #{tpu_custom_call.1}
  #allocation0 [shape = 'u32[]', space=smem, size = 0x4, offset = 0x4, fixed_abs, tag = 'smem constant byte address 0x4 - core index']
  #allocation1 [shape = 'u32[144,128]{1,0:T(1,128)}', space=vmem, size = 0x12000, scoped, tag = 'internal scratch']
  #allocation2 [shape = 'f32[1]{0:T(128)S(6)}', space=smem, size = 0x200, scoped, tag = 'scoped memory for tpu_custom_call.1']
  %s0 = inlined_call_operand.hbm [shape: f32[16,128], index: 0, kind: input, shape index: {}]
  %s1 = inlined_call_operand.hbm [shape: f32[16,128], index: 1, kind: input, shape index: {}]
  %s2 = inlined_call_operand.vmem [shape: f32[1,128], index: 2, kind: input, shape index: {}]
  %s3 = inlined_call_operand.vmem [shape: f32[1,128], index: 3, kind: input, shape index: {}]
  %s4 = inlined_call_operand.<no memory space> [shape: f32[1], index: 4, kind: input, shape index: {}]
  %s5 = inlined_call_operand.hbm [shape: f32[16,128], index: 5, kind: output, shape index: {0}]
  %s6 = inlined_call_operand.vmem [shape: f32[16,1], index: 6, kind: output, shape index: {1}]
  %7 = xla_tuple %s5, %s6
  %s8 = sld [smem:[#allocation0]]
  $region46: #{tpu_custom_call.1} parent=0
    _
  %s10 = ssub.s32 1, %s8
  %s11 = scalar_select 0, %s10, %s8
  %12 = sst [smem:[#allocation2]] %s4
  $region1: #{tpu_custom_call.1} parent=0
    #allocation3 [shape = 'u8[8192]{0}', space=vmem, size = 0x2000, scoped, tag = 'input window, operand 0, single buffered']
    #allocation4 [shape = 's32[1]{0}', space=sflag, size = 0x4, scoped, tag = 'scoped memory for tpu_custom_call.1']
    #allocation5 [shape = 's32[1]{0}', space=sflag, size = 0x4, scoped, tag = 'scoped memory for tpu_custom_call.1']
    #allocation6 [shape = 'u8[8192]{0}', space=vmem, size = 0x2000, scoped, tag = 'input window, operand 1, single buffered']
    #allocation7 [shape = 's32[1]{0}', space=sflag, size = 0x4, scoped, tag = 'scoped memory for tpu_custom_call.1']
    #allocation8 [shape = 'u8[8192]{0}', space=vmem, size = 0x2000, scoped, tag = 'output window, operand 0, single buffered']
    %13 = vsyncpa [#allocation4], 0
    %14 = vsyncpa [#allocation7], 0
    %15 = vsyncpa [#allocation5], 0
    // Predicated region
    $region2: #{tpu_custom_call.1} parent=1 // pred_check
      _
    $region3: #{tpu_custom_call.1} parent=1 // pred_check_branch
      %17 = sbr.rel (0) target = $region5
    $region4: #{tpu_custom_call.1} parent=1 // pred_region
      %s19 = ssub.s32 256, 256
      %20 = vsyncadd [#allocation4], %s19
      %s21 = sshll.u32 [#allocation3], 4
      %s22 = int_to_ptr.vmem [resolvable:$true] %s21
      %27 = dma.hbm_to_vmem [thread:$0]  %s0, 256, %s22, [#allocation4], 128, 128, 8
    $region5: #{tpu_custom_call.1} parent=1 // pred_fallthru
      _
    // Predicated region
    $region6: #{tpu_custom_call.1} parent=1 // pred_check
      _
    $region7: #{tpu_custom_call.1} parent=1 // pred_check_branch
      %29 = sbr.rel (0) target = $region9
    $region8: #{tpu_custom_call.1} parent=1 // pred_region
      %s31 = ssub.s32 256, 256
      %32 = vsyncadd [#allocation7], %s31
      %s33 = sshll.u32 [#allocation6], 4
      %s34 = int_to_ptr.vmem [resolvable:$true] %s33
      %39 = dma.hbm_to_vmem [thread:$0]  %s1, 256, %s34, [#allocation7], 128, 128, 8
    $region9: #{tpu_custom_call.1} parent=1 // pred_fallthru
      _
    // Predicated region
    $region10: #{tpu_custom_call.1} parent=1 // pred_check
      _
    $region11: #{tpu_custom_call.1} parent=1 // pred_check_branch
      %41 = sbr.rel (0) target = $region13
    $region12: #{tpu_custom_call.1} parent=1 // pred_region
      _
    $region13: #{tpu_custom_call.1} parent=1 // pred_fallthru
      _
    // Predicated region
    $region14: #{tpu_custom_call.1} parent=1 // pred_check
      _
    $region15: #{tpu_custom_call.1} parent=1 // pred_check_branch
      %43 = sbr.rel (0) target = $region17
    $region16: #{tpu_custom_call.1} parent=1 // pred_region
      _
    $region17: #{tpu_custom_call.1} parent=1 // pred_fallthru
      _
    // Predicated region
    $region18: #{tpu_custom_call.1} parent=1 // pred_check
      _
    $region19: #{tpu_custom_call.1} parent=1 // pred_check_branch
      %45 = sbr.rel (0) target = $region21
    $region20: #{tpu_custom_call.1} parent=1 // pred_region
      _
    $region21: #{tpu_custom_call.1} parent=1 // pred_fallthru
      _
    // Predicated region
    $region22: #{tpu_custom_call.1} parent=1 // pred_check
      _
    $region23: #{tpu_custom_call.1} parent=1 // pred_check_branch
      %47 = sbr.rel (0) target = $region25
    $region24: #{tpu_custom_call.1} parent=1 // pred_region
      %48 = dma.done [#allocation4], 256
    $region25: #{tpu_custom_call.1} parent=1 // pred_fallthru
      _
    // Predicated region
    $region26: #{tpu_custom_call.1} parent=1 // pred_check
      _
    $region27: #{tpu_custom_call.1} parent=1 // pred_check_branch
      %50 = sbr.rel (0) target = $region29
    $region28: #{tpu_custom_call.1} parent=1 // pred_region
      %51 = dma.done [#allocation7], 256
    $region29: #{tpu_custom_call.1} parent=1 // pred_fallthru
      _
    %s52 = sld [smem:[#allocation2]]
    %v53 = vstv %s52
    %v54 = vrcp.pop %v53
    %s55 = vtos %v54
    %v56 = vld [vmem:[#allocation3] sm:$0xff]
    %v57 = vld [vmem:[#allocation3 + $0x8] sm:$0xff]
    %v58 = vstv %s55
    %v59 = vmul.f32 %v56, %v58
    %v60 = vmul.f32 %v57, %v58
    %v61 = vld [vmem:[#allocation6] sm:$0xff]
    %v62 = vld [vmem:[#allocation6 + $0x8] sm:$0xff]
    %v63 = vadd.f32 %v59, %v61
    %v64 = vadd.f32 %v60, %v62
    %65 = vmax.xlane.f32.xlu0 %v59
    %v66 = vpop.xlane.xlu0 %65
    %67 = vmax.xlane.f32.xlu0 %v60
    %v68 = vpop.xlane.xlu0 %67
    %v69 = vsub.f32 %v59, %v66
    %v70 = vsub.f32 %v60, %v68
    %v71 = vmul.f32 %v69, 1.442695
    %v72 = vpow.pop %v71
    %v73 = vmul.f32 %v70, 1.442695
    %v74 = vpow.pop %v73
    %75 = vadd.xlane.f32.xlu0 %v72
    %v76 = vpop.xlane.xlu0 %75
    %77 = vadd.xlane.f32.xlu0 %v74
    %v78 = vpop.xlane.xlu0 %77
    %v79 = vlog2.pop %v76
    %v80 = vmul.f32 %v79, 0.6931472
    %v81 = vlog2.pop %v78
    %v82 = vmul.f32 %v81, 0.6931472
    %v83 = vadd.f32 %v66, %v80
    %v84 = vadd.f32 %v68, %v82
    %v85 = vlaneseq
    %v86 = vand.u32 %v85, 127
    %v87 = vld [vmem:[%s2] sm:$0x1]
    %v89 = vlaneseq
    %v90 = vshrl.u32 %v89, 7
    %v91 = vsub.s32 0, %v90
    %v92 = vrot.slane %v87, %v91
    %v94 = vld [vmem:[%s3] sm:$0x1]
    %95 = vmax.xlane.f32.xlu0 %v63
    %v96 = vpop.xlane.xlu0 %95
    %97 = vmax.xlane.f32.xlu0 %v64
    %v98 = vpop.xlane.xlu0 %97
    %vm99 = vcmp.eq.f32.partialorder %v63, %v96
    %vm100 = vcmp.eq.f32.partialorder %v64, %v98
    %v101 = vsel %vm99, %v86, 128
    %v102 = vsel %vm100, %v86, 128
    %v103 = vand.u32 %v101, 65535
    %v104 = vshra.s32 %v101, 16
    %v105 = vcvt.s32.f32 %v103
    %v106 = vcvt.s32.f32 %v104
    %107 = vmin.xlane.f32.xlu0 %v106
    %v108 = vpop.xlane.xlu0 %107
    %vm109 = vcmp.eq.f32.partialorder %v106, %v108
    %v110 = vsel %vm109, %v105, inf
    %111 = vmin.xlane.f32.xlu0 %v110
    %v112 = vpop.xlane.xlu0 %111
    %v113 = vcvt.f32.s32 %v112
    %v114 = vcvt.f32.s32 %v108
    %v115 = vshll.u32 %v114, 16
    %v116 = vadd.s32 %v115, %v113
    %v117 = vand.u32 %v102, 65535
    %v118 = vshra.s32 %v102, 16
    %v119 = vcvt.s32.f32 %v117
    %v120 = vcvt.s32.f32 %v118
    %121 = vmin.xlane.f32.xlu0 %v120
    %v122 = vpop.xlane.xlu0 %121
    %vm123 = vcmp.eq.f32.partialorder %v120, %v122
    %v124 = vsel %vm123, %v119, inf
    %125 = vmin.xlane.f32.xlu0 %v124
    %v126 = vpop.xlane.xlu0 %125
    %v127 = vcvt.f32.s32 %v126
    %v128 = vcvt.f32.s32 %v122
    %v129 = vshll.u32 %v128, 16
    %v130 = vadd.s32 %v129, %v127
    %vm131 = vcmp.eq.s32.totalorder %v86, %v116
    %vm132 = vcmp.eq.s32.totalorder %v86, %v130
    %v133 = vsel %vm131, 1.0, 0.0
    %v134 = vsel %vm132, 1.0, 0.0
    %v135 = vsel %vm131, %v59, 0.0
    %v136 = vsel %vm132, %v60, 0.0
    %137 = vadd.xlane.f32.xlu0 %v135
    %v138 = vpop.xlane.xlu0 %137
    %139 = vadd.xlane.f32.xlu0 %v136
    %v140 = vpop.xlane.xlu0 %139
    %v141 = vsub.f32 %v138, %v83
    %v142 = vsub.f32 %v140, %v84
    %v143 = vmul.f32 %v141, 1.442695
    %v144 = vpow.pop %v143
    %v145 = vmul.f32 %v142, 1.442695
    %v146 = vpow.pop %v145
    %v147 = vadd.f32 %v144, 0.0
    %v148 = vadd.f32 %v146, 0.0
    %v149 = vmul.f32 %v144, %v92
    %v150 = vmul.f32 %v146, %v92
    %v151 = vmul.f32 %v149, 1.442695
    %v152 = vpow.pop %v151
    %v153 = vmul.f32 %v150, 1.442695
    %v154 = vpow.pop %v153
    %v155 = vmin.f32 %v152, 0.9999999
    %v156 = vmin.f32 %v154, 0.9999999
    %v157 = vsub.f32 1.0, %v155
    %v158 = vsub.f32 1.0, %v156
    %v159 = vsel %vm131, -inf, %v63
    %v160 = vsel %vm132, -inf, %v64
    %161 = vmax.xlane.f32.xlu0 %v159
    %v162 = vpop.xlane.xlu0 %161
    %163 = vmax.xlane.f32.xlu0 %v160
    %v164 = vpop.xlane.xlu0 %163
    %vm165 = vcmp.eq.f32.partialorder %v159, %v162
    %vm166 = vcmp.eq.f32.partialorder %v160, %v164
    %v167 = vsel %vm165, %v86, 128
    %v168 = vsel %vm166, %v86, 128
    %v169 = vand.u32 %v167, 65535
    %v170 = vshra.s32 %v167, 16
    %v171 = vcvt.s32.f32 %v169
    %v172 = vcvt.s32.f32 %v170
    %173 = vmin.xlane.f32.xlu0 %v172
    %v174 = vpop.xlane.xlu0 %173
    %vm175 = vcmp.eq.f32.partialorder %v172, %v174
    %v176 = vsel %vm175, %v171, inf
    %177 = vmin.xlane.f32.xlu0 %v176
    %v178 = vpop.xlane.xlu0 %177
    %v179 = vcvt.f32.s32 %v178
    %v180 = vcvt.f32.s32 %v174
    %v181 = vshll.u32 %v180, 16
    %v182 = vadd.s32 %v181, %v179
    %v183 = vand.u32 %v168, 65535
    %v184 = vshra.s32 %v168, 16
    %v185 = vcvt.s32.f32 %v183
    %v186 = vcvt.s32.f32 %v184
    %187 = vmin.xlane.f32.xlu0 %v186
    %v188 = vpop.xlane.xlu0 %187
    %vm189 = vcmp.eq.f32.partialorder %v186, %v188
    %v190 = vsel %vm189, %v185, inf
    %191 = vmin.xlane.f32.xlu0 %v190
    %v192 = vpop.xlane.xlu0 %191
    %v193 = vcvt.f32.s32 %v192
    %v194 = vcvt.f32.s32 %v188
    %v195 = vshll.u32 %v194, 16
    %v196 = vadd.s32 %v195, %v193
    %vm197 = vcmp.eq.s32.totalorder %v86, %v182
    %vm198 = vcmp.eq.s32.totalorder %v86, %v196
    %v199 = vsel %vm197, 1.0, %v133
    %v200 = vsel %vm198, 1.0, %v134
    %v201 = vsel %vm197, %v59, 0.0
    %v202 = vsel %vm198, %v60, 0.0
    %203 = vadd.xlane.f32.xlu0 %v201
    %v204 = vpop.xlane.xlu0 %203
    %205 = vadd.xlane.f32.xlu0 %v202
    %v206 = vpop.xlane.xlu0 %205
    %v207 = vsub.f32 %v204, %v83
    %v208 = vsub.f32 %v206, %v84
    %v209 = vmul.f32 %v207, 1.442695
    %v210 = vpow.pop %v209
    %v211 = vmul.f32 %v208, 1.442695
    %v212 = vpow.pop %v211
    %v213 = vadd.f32 %v147, %v210
    %v214 = vadd.f32 %v148, %v212
    %v215 = vmul.f32 %v210, %v92
    %v216 = vmul.f32 %v212, %v92
    %v217 = vmul.f32 %v215, 1.442695
    %v218 = vpow.pop %v217
    %v219 = vmul.f32 %v216, 1.442695
    %v220 = vpow.pop %v219
    %v221 = vmin.f32 %v218, 0.9999999
    %v222 = vmin.f32 %v220, 0.9999999
    %v223 = vsub.f32 1.0, %v221
    %v224 = vsub.f32 1.0, %v222
    %v225 = vmul.f32 %v157, %v223
    %v226 = vmul.f32 %v158, %v224
    %v227 = vsel %vm197, -inf, %v159
    %v228 = vsel %vm198, -inf, %v160
    %229 = vmax.xlane.f32.xlu0 %v227
    %v230 = vpop.xlane.xlu0 %229
    %231 = vmax.xlane.f32.xlu0 %v228
    %v232 = vpop.xlane.xlu0 %231
    %vm233 = vcmp.eq.f32.partialorder %v227, %v230
    %vm234 = vcmp.eq.f32.partialorder %v228, %v232
    %v235 = vsel %vm233, %v86, 128
    %v236 = vsel %vm234, %v86, 128
    %v237 = vand.u32 %v235, 65535
    %v238 = vshra.s32 %v235, 16
    %v239 = vcvt.s32.f32 %v237
    %v240 = vcvt.s32.f32 %v238
    %241 = vmin.xlane.f32.xlu0 %v240
    %v242 = vpop.xlane.xlu0 %241
    %vm243 = vcmp.eq.f32.partialorder %v240, %v242
    %v244 = vsel %vm243, %v239, inf
    %245 = vmin.xlane.f32.xlu0 %v244
    %v246 = vpop.xlane.xlu0 %245
    %v247 = vcvt.f32.s32 %v246
    %v248 = vcvt.f32.s32 %v242
    %v249 = vshll.u32 %v248, 16
    %v250 = vadd.s32 %v249, %v247
    %v251 = vand.u32 %v236, 65535
    %v252 = vshra.s32 %v236, 16
    %v253 = vcvt.s32.f32 %v251
    %v254 = vcvt.s32.f32 %v252
    %255 = vmin.xlane.f32.xlu0 %v254
    %v256 = vpop.xlane.xlu0 %255
    %vm257 = vcmp.eq.f32.partialorder %v254, %v256
    %v258 = vsel %vm257, %v253, inf
    %259 = vmin.xlane.f32.xlu0 %v258
    %v260 = vpop.xlane.xlu0 %259
    %v261 = vcvt.f32.s32 %v260
    %v262 = vcvt.f32.s32 %v256
    %v263 = vshll.u32 %v262, 16
    %v264 = vadd.s32 %v263, %v261
    %vm265 = vcmp.eq.s32.totalorder %v86, %v250
    %vm266 = vcmp.eq.s32.totalorder %v86, %v264
    %v267 = vsel %vm265, 1.0, %v199
    %v268 = vsel %vm266, 1.0, %v200
    %v269 = vsel %vm265, %v59, 0.0
    %v270 = vsel %vm266, %v60, 0.0
    %271 = vadd.xlane.f32.xlu0 %v269
    %v272 = vpop.xlane.xlu0 %271
    %273 = vadd.xlane.f32.xlu0 %v270
    %v274 = vpop.xlane.xlu0 %273
    %v275 = vsub.f32 %v272, %v83
    %v276 = vsub.f32 %v274, %v84
    %v277 = vmul.f32 %v275, 1.442695
    %v278 = vpow.pop %v277
    %v279 = vmul.f32 %v276, 1.442695
    %v280 = vpow.pop %v279
    %v281 = vadd.f32 %v213, %v278
    %v282 = vadd.f32 %v214, %v280
    %v283 = vmul.f32 %v278, %v92
    %v284 = vmul.f32 %v280, %v92
    %v285 = vmul.f32 %v283, 1.442695
    %v286 = vpow.pop %v285
    %v287 = vmul.f32 %v284, 1.442695
    %v288 = vpow.pop %v287
    %v289 = vmin.f32 %v286, 0.9999999
    %v290 = vmin.f32 %v288, 0.9999999
    %v291 = vsub.f32 1.0, %v289
    %v292 = vsub.f32 1.0, %v290
    %v293 = vmul.f32 %v225, %v291
    %v294 = vmul.f32 %v226, %v292
    %v295 = vsel %vm265, -inf, %v227
    %v296 = vsel %vm266, -inf, %v228
    %297 = vmax.xlane.f32.xlu0 %v295
    %v298 = vpop.xlane.xlu0 %297
    %299 = vmax.xlane.f32.xlu0 %v296
    %v300 = vpop.xlane.xlu0 %299
    %vm301 = vcmp.eq.f32.partialorder %v295, %v298
    %vm302 = vcmp.eq.f32.partialorder %v296, %v300
    %v303 = vsel %vm301, %v86, 128
    %v304 = vsel %vm302, %v86, 128
    %v305 = vand.u32 %v303, 65535
    %v306 = vshra.s32 %v303, 16
    %v307 = vcvt.s32.f32 %v305
    %v308 = vcvt.s32.f32 %v306
    %309 = vmin.xlane.f32.xlu0 %v308
    %v310 = vpop.xlane.xlu0 %309
    %vm311 = vcmp.eq.f32.partialorder %v308, %v310
    %v312 = vsel %vm311, %v307, inf
    %313 = vmin.xlane.f32.xlu0 %v312
    %v314 = vpop.xlane.xlu0 %313
    %v315 = vcvt.f32.s32 %v314
    %v316 = vcvt.f32.s32 %v310
    %v317 = vshll.u32 %v316, 16
    %v318 = vadd.s32 %v317, %v315
    %v319 = vand.u32 %v304, 65535
    %v320 = vshra.s32 %v304, 16
    %v321 = vcvt.s32.f32 %v319
    %v322 = vcvt.s32.f32 %v320
    %323 = vmin.xlane.f32.xlu0 %v322
    %v324 = vpop.xlane.xlu0 %323
    %vm325 = vcmp.eq.f32.partialorder %v322, %v324
    %v326 = vsel %vm325, %v321, inf
    %327 = vmin.xlane.f32.xlu0 %v326
    %v328 = vpop.xlane.xlu0 %327
    %v329 = vcvt.f32.s32 %v328
    %v330 = vcvt.f32.s32 %v324
    %v331 = vshll.u32 %v330, 16
    %v332 = vadd.s32 %v331, %v329
    %vm333 = vcmp.eq.s32.totalorder %v86, %v318
    %vm334 = vcmp.eq.s32.totalorder %v86, %v332
    %v335 = vsel %vm333, 1.0, %v267
    %v336 = vsel %vm334, 1.0, %v268
    %v337 = vsel %vm333, %v59, 0.0
    %v338 = vsel %vm334, %v60, 0.0
    %339 = vadd.xlane.f32.xlu0 %v337
    %v340 = vpop.xlane.xlu0 %339
    %341 = vadd.xlane.f32.xlu0 %v338
    %v342 = vpop.xlane.xlu0 %341
    %v343 = vsub.f32 %v340, %v83
    %v344 = vsub.f32 %v342, %v84
    %v345 = vmul.f32 %v343, 1.442695
    %v346 = vpow.pop %v345
    %v347 = vmul.f32 %v344, 1.442695
    %v348 = vpow.pop %v347
    %v349 = vadd.f32 %v281, %v346
    %v350 = vadd.f32 %v282, %v348
    %v351 = vmul.f32 %v346, %v92
    %v352 = vmul.f32 %v348, %v92
    %v353 = vmul.f32 %v351, 1.442695
    %v354 = vpow.pop %v353
    %v355 = vmul.f32 %v352, 1.442695
    %v356 = vpow.pop %v355
    %v357 = vmin.f32 %v354, 0.9999999
    %v358 = vmin.f32 %v356, 0.9999999
    %v359 = vsub.f32 1.0, %v357
    %v360 = vsub.f32 1.0, %v358
    %v361 = vmul.f32 %v293, %v359
    %v362 = vmul.f32 %v294, %v360
    %363 = vst [vmem:[#allocation8] sm:$0xff] %v335
    %364 = vst [vmem:[#allocation8 + $0x8] sm:$0xff] %v336
    %v365 = vmin.f32 %v349, 0.999999
    %v366 = vmin.f32 %v350, 0.999999
    %v367 = vsub.f32 0.0, %v365
    %v368 = vsub.f32 0.0, %v366
    %v369 = vmul.f32 %v367, %v92
    %v370 = vmul.f32 %v368, %v92
    %v371 = vmul.f32 %v369, 1.442695
    %v372 = vpow.pop %v371
    %v373 = vmul.f32 %v370, 1.442695
    %v374 = vpow.pop %v373
    %v376 = vlaneseq
    %v377 = vshrl.u32 %v376, 7
    %v378 = vsub.s32 0, %v377
    %v379 = vrot.slane %v94, %v378
    %v381 = vmul.f32 %v379, %v372
    %v382 = vmul.f32 %v379, %v374
    %v383 = vmul.f32 %v381, %v361
    %v384 = vmul.f32 %v382, %v362
    %385 = vadd.xlane.f32.xlu0 %v383
    %v386 = vpop.xlane.xlu0 %385
    %387 = vadd.xlane.f32.xlu0 %v384
    %v388 = vpop.xlane.xlu0 %387
    %v389 = vadd.f32 %v367, 1.0
    %v390 = vlog2.pop %v389
    %v391 = vmul.f32 %v390, 0.6931472
    %v392 = vmul.f32 -0.5, %v367
    %v393 = vadd.f32 %v392, 1.0
    %v394 = vmul.f32 %v393, %v367
    %v395 = vand.u32 2147483647, %v367
    %vm396 = vcmp.lt.f32.partialorder %v395, 0.0004427343
    %v397 = vsel %vm396, %v394, %v391
    %v398 = vadd.f32 %v368, 1.0
    %v399 = vlog2.pop %v398
    %v400 = vmul.f32 %v399, 0.6931472
    %v401 = vmul.f32 -0.5, %v368
    %v402 = vadd.f32 %v401, 1.0
    %v403 = vmul.f32 %v402, %v368
    %v404 = vand.u32 2147483647, %v368
    %vm405 = vcmp.lt.f32.partialorder %v404, 0.0004427343
    %v406 = vsel %vm405, %v403, %v400
    %v407 = vmax.f32 %v386, 1e-35
    %v408 = vmax.f32 %v388, 1e-35
    %v409 = vlog2.pop %v407
    %v410 = vmul.f32 %v409, 0.6931472
    %v411 = vlog2.pop %v408
    %v412 = vmul.f32 %v411, 0.6931472
    %v413 = vadd.f32 %v397, %v410
    %v414 = vadd.f32 %v406, %v412
    %vm415 = vcmask 7168
    %416 = vst.msk [vmem:[%s6] sm:$0xff] %vm415, %v413
    %417 = vst.msk [vmem:[%s6 + $0x8] sm:$0xff] %vm415, %v414
    // Predicated region
    $region30: #{tpu_custom_call.1} parent=1 // pred_check
      _
    $region31: #{tpu_custom_call.1} parent=1 // pred_check_branch
      %419 = sbr.rel (0) target = $region33
    $region32: #{tpu_custom_call.1} parent=1 // pred_region
      %s421 = ssub.s32 256, 256
      %422 = vsyncadd [#allocation5], %s421
      %s423 = sshll.u32 [#allocation8], 4
      %s424 = int_to_ptr.vmem [resolvable:$true] %s423
      %429 = dma.vmem_to_hbm [thread:$0]  %s424, 256, %s5, [#allocation5], 128, 128, 8
    $region33: #{tpu_custom_call.1} parent=1 // pred_fallthru
      _
    // Predicated region
    $region34: #{tpu_custom_call.1} parent=1 // pred_check
      _
    $region35: #{tpu_custom_call.1} parent=1 // pred_check_branch
      %431 = sbr.rel (0) target = $region37
    $region36: #{tpu_custom_call.1} parent=1 // pred_region
      _
    $region37: #{tpu_custom_call.1} parent=1 // pred_fallthru
      _
    // Predicated region
    $region38: #{tpu_custom_call.1} parent=1 // pred_check
      _
    $region39: #{tpu_custom_call.1} parent=1 // pred_check_branch
      %433 = sbr.rel (0) target = $region41
    $region40: #{tpu_custom_call.1} parent=1 // pred_region
      %434 = dma.done [#allocation5], 256
    $region41: #{tpu_custom_call.1} parent=1 // pred_fallthru
      _
    // Predicated region
    $region42: #{tpu_custom_call.1} parent=1 // pred_check
      _
    $region43: #{tpu_custom_call.1} parent=1 // pred_check_branch
      %436 = sbr.rel (0) target = $region45
    $region44: #{tpu_custom_call.1} parent=1 // pred_region
      _
    $region45: #{tpu_custom_call.1} parent=1 // pred_fallthru
      _
    %437 = vsyncpa [#allocation4], 1
    %438 = vsyncpa [#allocation7], 1
    %439 = vsyncpa [#allocation5], 1

</llo_original>
